<compile_context>
chip_gen: v6e
topology: v6e:2x2x1
jax: 0.10.0
libtpu: 0.0.40
codegen_flags: <defaults>
</compile_context>

<pallas_src>
import jax
import jax.numpy as jnp
from jax.experimental import pallas as pl
from jax.experimental.pallas import tpu as pltpu


# ---------------------------------------------------------------------------
# Kernel
# ---------------------------------------------------------------------------
def actor_kernel(
    s_ref, g_ref,                       # (TB, F) activations, f32
    w_film_ref, b_film_ref,             # (F, 4F) bf16, (1, 4F) f32  (gamma bias has +1 folded in)
    w1_ref, b1_ref,                     # (F, F) bf16, (1, F) f32
    w2_ref, b2_ref,                     # (F, F) bf16, (1, F) f32
    w3_ref, b3_ref,                     # (F, A_pad) bf16, (1, A_pad) f32  (zero-padded to 128 lanes)
    out_ref,                            # (TB, A_pad) f32
):
    s = s_ref[...]
    g_bf = g_ref[...].astype(jnp.bfloat16)
    F = s.shape[1]

    # Single fused FiLM projection: [TB, 4F] = g @ [F, 4F]  (f32 accumulation).
    film = jnp.dot(g_bf, w_film_ref[...], preferred_element_type=jnp.float32) + b_film_ref[...]
    gamma1_p1 = film[:, 0 * F:1 * F]    # gamma1 + 1 (residual folded into bias)
    beta1     = film[:, 1 * F:2 * F]
    gamma2_p1 = film[:, 2 * F:3 * F]    # gamma2 + 1
    beta2     = film[:, 3 * F:4 * F]

    # FiLM1 + residual, FiLM2 + residual (f32 elementwise).
    x = gamma1_p1 * s + beta1
    x = gamma2_p1 * x + beta2

    # MLP head: ff1 -> relu -> ff2 -> relu -> ff3 (bf16 operands, f32 accum).
    h = jnp.dot(x.astype(jnp.bfloat16), w1_ref[...], preferred_element_type=jnp.float32) + b1_ref[...]
    h = jnp.maximum(h, 0.0)
    h = jnp.dot(h.astype(jnp.bfloat16), w2_ref[...], preferred_element_type=jnp.float32) + b2_ref[...]
    h = jnp.maximum(h, 0.0)
    out = jnp.dot(h.astype(jnp.bfloat16), w3_ref[...], preferred_element_type=jnp.float32) + b3_ref[...]

    out_ref[...] = out.astype(out_ref.dtype)


# ---------------------------------------------------------------------------
# Param packing (kernel-facing copy; the f32 reference keeps the raw params)
# ---------------------------------------------------------------------------
def prepare_params(params):
    F = params["w1"].shape[0]
    A = params["w3"].shape[1]
    A_pad = ((A + 127) // 128) * 128

    # Fused FiLM weights [F, 4F]; +1 folded into gamma biases (residual fold).
    w_film = jnp.concatenate(
        [params["wg1"], params["wb1"], params["wg2"], params["wb2"]], axis=1
    ).astype(jnp.bfloat16)
    b_film = jnp.concatenate(
        [params["bg1"] + 1.0, params["bb1"], params["bg2"] + 1.0, params["bb2"]], axis=1
    ).astype(jnp.float32)

    # Lane-dense (128-wide) ff3 weight/bias.
    w3p = jnp.zeros((F, A_pad), jnp.float32).at[:, :A].set(params["w3"]).astype(jnp.bfloat16)
    b3p = jnp.zeros((1, A_pad), jnp.float32).at[:, :A].set(params["b3"])

    return dict(
        w_film=w_film, b_film=b_film,
        w1=params["w1"].astype(jnp.bfloat16), b1=params["b1"].astype(jnp.float32),
        w2=params["w2"].astype(jnp.bfloat16), b2=params["b2"].astype(jnp.float32),
        w3=w3p, b3=b3p,
        action_size=A,
    )


# ---------------------------------------------------------------------------
# Wrapper
# ---------------------------------------------------------------------------
def actor_forward(state_action_emb, goal, prepped, *, tile_b=8):
    B, F = state_action_emb.shape
    A = prepped["action_size"]
    A_pad = prepped["w3"].shape[1]

    # Pad batch to a multiple of the batch tile.
    B_pad = ((B + tile_b - 1) // tile_b) * tile_b
    if B_pad != B:
        pad = B_pad - B
        state_action_emb = jnp.pad(state_action_emb, ((0, pad), (0, 0)))
        goal = jnp.pad(goal, ((0, pad), (0, 0)))

    weight_args = (
        prepped["w_film"], prepped["b_film"],
        prepped["w1"], prepped["b1"],
        prepped["w2"], prepped["b2"],
        prepped["w3"], prepped["b3"],
    )

    # Activations tile over batch; weights stay VMEM-resident across grid steps.
    act_spec = pl.BlockSpec((tile_b, F), lambda i: (i, 0))
    out_spec = pl.BlockSpec((tile_b, A_pad), lambda i: (i, 0))
    in_specs = [act_spec, act_spec] + [
        pl.BlockSpec(w.shape, lambda i: (0, 0)) for w in weight_args
    ]

    # Advisory cost estimate (fused FiLM 4F + ff1 F + ff2 F + ff3 A_pad).
    flops = 2 * B_pad * F * (4 * F + F + F + A_pad)
    bytes_weights = sum(int(w.size) * w.dtype.itemsize for w in weight_args)
    bytes_acts = (2 * B_pad * F + B_pad * A_pad) * 4
    cost = pl.CostEstimate(
        flops=flops, transcendentals=0, bytes_accessed=bytes_weights + bytes_acts
    )

    out_padded = pl.pallas_call(
        actor_kernel,
        out_shape=jax.ShapeDtypeStruct((B_pad, A_pad), jnp.float32),
        grid=(B_pad // tile_b,),
        in_specs=in_specs,
        out_specs=out_spec,
        compiler_params=pltpu.CompilerParams(dimension_semantics=("parallel",)),
        cost_estimate=cost,
    )(state_action_emb, goal, *weight_args)

    return out_padded[:B, :A]


# ---------------------------------------------------------------------------
# Deterministic synthetic params (Linear weights stored as [in, out])
# ---------------------------------------------------------------------------
def init_params(key, feature_size=128, action_size=7):
    keys = jax.random.split(key, 16)

    def lin(kw, kb, fan_in, fan_out):
        bound = 1.0 / jnp.sqrt(fan_in)
        w = jax.random.uniform(kw, (fan_in, fan_out), jnp.float32, -bound, bound)
        b = jax.random.uniform(kb, (1, fan_out), jnp.float32, -bound, bound)
        return w, b

    wg1, bg1 = lin(keys[0], keys[1], feature_size, feature_size)
    wb1, bb1 = lin(keys[2], keys[3], feature_size, feature_size)
    wg2, bg2 = lin(keys[4], keys[5], feature_size, feature_size)
    wb2, bb2 = lin(keys[6], keys[7], feature_size, feature_size)
    w1, b1 = lin(keys[8], keys[9], feature_size, feature_size)
    w2, b2 = lin(keys[10], keys[11], feature_size, feature_size)
    w3, b3 = lin(keys[12], keys[13], feature_size, action_size)

    return dict(
        wg1=wg1, bg1=bg1, wb1=wb1, bb1=bb1,
        wg2=wg2, bg2=bg2, wb2=wb2, bb2=bb2,
        w1=w1, b1=b1, w2=w2, b2=b2, w3=w3, b3=b3,
    )


# ---------------------------------------------------------------------------
# References
# ---------------------------------------------------------------------------
def actor_reference_f32(state_action_emb, goal, params):
    """Pure-JAX f32 reference matching the original module math."""
    def film(x, g, wg, bg, wb, bb):
        return (g @ wg + bg) * x + (g @ wb + bb)

    x = film(state_action_emb, goal,
             params["wg1"], params["bg1"], params["wb1"], params["bb1"]) + state_action_emb
    x = film(x, goal,
             params["wg2"], params["bg2"], params["wb2"], params["bb2"]) + x
    x = jnp.maximum(x @ params["w1"] + params["b1"], 0.0)
    x = jnp.maximum(x @ params["w2"] + params["b2"], 0.0)
    return x @ params["w3"] + params["b3"]


def actor_reference_quantized(state_action_emb, goal, prepped):
    """Pure-JAX reference replicating the kernel's bf16-operand / f32-accum math."""
    F = state_action_emb.shape[1]
    g_bf = goal.astype(jnp.bfloat16)
    film = jnp.dot(g_bf, prepped["w_film"], preferred_element_type=jnp.float32) + prepped["b_film"]
    x = film[:, 0 * F:1 * F] * state_action_emb + film[:, 1 * F:2 * F]
    x = film[:, 2 * F:3 * F] * x + film[:, 3 * F:4 * F]
    h = jnp.maximum(
        jnp.dot(x.astype(jnp.bfloat16), prepped["w1"], preferred_element_type=jnp.float32)
        + prepped["b1"], 0.0)
    h = jnp.maximum(
        jnp.dot(h.astype(jnp.bfloat16), prepped["w2"], preferred_element_type=jnp.float32)
        + prepped["b2"], 0.0)
    out = jnp.dot(h.astype(jnp.bfloat16), prepped["w3"], preferred_element_type=jnp.float32) + prepped["b3"]
    return out[:, :prepped["action_size"]]


if __name__ == "__main__":
    FEATURE_SIZE = 128   # small stand-in for the 512 used in the original module
    ACTION_SIZE = 7
    BATCH = 16
    TILE_B = 8

    key = jax.random.PRNGKey(0)
    k_params, k_s, k_g = jax.random.split(key, 3)

    params = init_params(k_params, FEATURE_SIZE, ACTION_SIZE)
    prepped = prepare_params(params)

    state_action_emb = jax.random.normal(k_s, (BATCH, FEATURE_SIZE), jnp.float32)
    goal = jax.random.normal(k_g, (BATCH, FEATURE_SIZE), jnp.float32)

    out = actor_forward(state_action_emb, goal, prepped, tile_b=TILE_B)
    out = jax.block_until_ready(out)
    assert out.shape == (BATCH, ACTION_SIZE), out.shape

    # Tight check vs. a reference using the same bf16-operand math as the kernel.
    ref_q = actor_reference_quantized(state_action_emb, goal, prepped)
    assert jnp.allclose(out, ref_q, atol=5e-3, rtol=5e-3), float(jnp.max(jnp.abs(out - ref_q)))

    # Loose sanity check vs. the full-f32 module semantics (bf16 weight quantization noise).
    ref_f32 = actor_reference_f32(state_action_emb, goal, params)
    assert jnp.allclose(out, ref_f32, atol=1e-1, rtol=1e-1), float(jnp.max(jnp.abs(out - ref_f32)))

    print("KERNEL_OK")
</pallas_src>

<mosaic_0001>
module attributes {stable_mosaic.version = 11 : i64} {
  func.func @actor_kernel(%arg0: i32, %arg1: memref<8x128xf32, #tpu.memory_space<vmem>>, %arg2: memref<8x128xf32, #tpu.memory_space<vmem>>, %arg3: memref<128x512xbf16, #tpu.memory_space<vmem>>, %arg4: memref<1x512xf32, #tpu.memory_space<vmem>>, %arg5: memref<128x128xbf16, #tpu.memory_space<vmem>>, %arg6: memref<1x128xf32, #tpu.memory_space<vmem>>, %arg7: memref<128x128xbf16, #tpu.memory_space<vmem>>, %arg8: memref<1x128xf32, #tpu.memory_space<vmem>>, %arg9: memref<128x128xbf16, #tpu.memory_space<vmem>>, %arg10: memref<1x128xf32, #tpu.memory_space<vmem>>, %arg11: memref<8x128xf32, #tpu.memory_space<vmem>>) attributes {dimension_semantics = [#tpu.dimension_semantics<parallel>], iteration_bounds = array<i64: 2>, scalar_prefetch = 0 : i64, scratch_operands = 0 : i64, tpu.core_type = #tpu.core_type<tc>, window_params = [{transform_indices = @transform_0, window_bounds = array<i64: 8, 128>}, {transform_indices = @transform_1, window_bounds = array<i64: 8, 128>}, {pipeline_mode = #tpu.pipeline_mode<synchronous>, transform_indices = @transform_2, window_bounds = array<i64: 128, 512>}, {pipeline_mode = #tpu.pipeline_mode<synchronous>, transform_indices = @transform_3, window_bounds = array<i64: 1, 512>}, {pipeline_mode = #tpu.pipeline_mode<synchronous>, transform_indices = @transform_4, window_bounds = array<i64: 128, 128>}, {pipeline_mode = #tpu.pipeline_mode<synchronous>, transform_indices = @transform_5, window_bounds = array<i64: 1, 128>}, {pipeline_mode = #tpu.pipeline_mode<synchronous>, transform_indices = @transform_6, window_bounds = array<i64: 128, 128>}, {pipeline_mode = #tpu.pipeline_mode<synchronous>, transform_indices = @transform_7, window_bounds = array<i64: 1, 128>}, {pipeline_mode = #tpu.pipeline_mode<synchronous>, transform_indices = @transform_8, window_bounds = array<i64: 128, 128>}, {pipeline_mode = #tpu.pipeline_mode<synchronous>, transform_indices = @transform_9, window_bounds = array<i64: 1, 128>}, {transform_indices = @transform_10, window_bounds = array<i64: 8, 128>}]} {
    %c0 = arith.constant 0 : index
    %c0_0 = arith.constant 0 : index
    %0 = vector.load %arg1[%c0, %c0_0] : memref<8x128xf32, #tpu.memory_space<vmem>>, vector<8x128xf32>
    %c0_1 = arith.constant 0 : index
    %c0_2 = arith.constant 0 : index
    %1 = vector.load %arg2[%c0_1, %c0_2] : memref<8x128xf32, #tpu.memory_space<vmem>>, vector<8x128xf32>
    %2 = arith.truncf %1 : vector<8x128xf32> to vector<8x128xbf16>
    %c0_3 = arith.constant 0 : index
    %c0_4 = arith.constant 0 : index
    %3 = vector.load %arg3[%c0_3, %c0_4] : memref<128x512xbf16, #tpu.memory_space<vmem>>, vector<128x512xbf16>
    %cst = arith.constant dense<0.000000e+00> : vector<8x512xf32>
    %4 = tpu.matmul %2, %3, %cst {dimension_numbers = #tpu.dot_dimension_numbers<[1], [0], [0], [1], [0, 0, 1, 1], [], []>} : vector<8x128xbf16>, vector<128x512xbf16>, vector<8x512xf32> -> vector<8x512xf32>
    %c0_5 = arith.constant 0 : index
    %c0_6 = arith.constant 0 : index
    %5 = vector.load %arg4[%c0_5, %c0_6] : memref<1x512xf32, #tpu.memory_space<vmem>>, vector<1x512xf32>
    %6 = vector.broadcast %5 : vector<1x512xf32> to vector<8x512xf32>
    %7 = arith.addf %4, %6 : vector<8x512xf32>
    %8 = vector.extract_strided_slice %7 {offsets = [0, 0], sizes = [8, 128], strides = [1, 1]} : vector<8x512xf32> to vector<8x128xf32>
    %9 = vector.extract_strided_slice %7 {offsets = [0, 128], sizes = [8, 128], strides = [1, 1]} : vector<8x512xf32> to vector<8x128xf32>
    %10 = vector.extract_strided_slice %7 {offsets = [0, 256], sizes = [8, 128], strides = [1, 1]} : vector<8x512xf32> to vector<8x128xf32>
    %11 = vector.extract_strided_slice %7 {offsets = [0, 384], sizes = [8, 128], strides = [1, 1]} : vector<8x512xf32> to vector<8x128xf32>
    %12 = arith.mulf %8, %0 : vector<8x128xf32>
    %13 = arith.addf %12, %9 : vector<8x128xf32>
    %14 = arith.mulf %10, %13 : vector<8x128xf32>
    %15 = arith.addf %14, %11 : vector<8x128xf32>
    %16 = arith.truncf %15 : vector<8x128xf32> to vector<8x128xbf16>
    %c0_7 = arith.constant 0 : index
    %c0_8 = arith.constant 0 : index
    %17 = vector.load %arg5[%c0_7, %c0_8] : memref<128x128xbf16, #tpu.memory_space<vmem>>, vector<128x128xbf16>
    %cst_9 = arith.constant dense<0.000000e+00> : vector<8x128xf32>
    %18 = tpu.matmul %16, %17, %cst_9 {dimension_numbers = #tpu.dot_dimension_numbers<[1], [0], [0], [1], [0, 0, 1, 1], [], []>} : vector<8x128xbf16>, vector<128x128xbf16>, vector<8x128xf32> -> vector<8x128xf32>
    %c0_10 = arith.constant 0 : index
    %c0_11 = arith.constant 0 : index
    %19 = vector.load %arg6[%c0_10, %c0_11] : memref<1x128xf32, #tpu.memory_space<vmem>>, vector<1x128xf32>
    %20 = vector.broadcast %19 : vector<1x128xf32> to vector<8x128xf32>
    %21 = arith.addf %18, %20 : vector<8x128xf32>
    %cst_12 = arith.constant 0.000000e+00 : f32
    %22 = vector.broadcast %cst_12 : f32 to vector<8x128xf32>
    %23 = arith.maximumf %21, %22 : vector<8x128xf32>
    %24 = arith.truncf %23 : vector<8x128xf32> to vector<8x128xbf16>
    %c0_13 = arith.constant 0 : index
    %c0_14 = arith.constant 0 : index
    %25 = vector.load %arg7[%c0_13, %c0_14] : memref<128x128xbf16, #tpu.memory_space<vmem>>, vector<128x128xbf16>
    %cst_15 = arith.constant dense<0.000000e+00> : vector<8x128xf32>
    %26 = tpu.matmul %24, %25, %cst_15 {dimension_numbers = #tpu.dot_dimension_numbers<[1], [0], [0], [1], [0, 0, 1, 1], [], []>} : vector<8x128xbf16>, vector<128x128xbf16>, vector<8x128xf32> -> vector<8x128xf32>
    %c0_16 = arith.constant 0 : index
    %c0_17 = arith.constant 0 : index
    %27 = vector.load %arg8[%c0_16, %c0_17] : memref<1x128xf32, #tpu.memory_space<vmem>>, vector<1x128xf32>
    %28 = vector.broadcast %27 : vector<1x128xf32> to vector<8x128xf32>
    %29 = arith.addf %26, %28 : vector<8x128xf32>
    %cst_18 = arith.constant 0.000000e+00 : f32
    %30 = vector.broadcast %cst_18 : f32 to vector<8x128xf32>
    %31 = arith.maximumf %29, %30 : vector<8x128xf32>
    %32 = arith.truncf %31 : vector<8x128xf32> to vector<8x128xbf16>
    %c0_19 = arith.constant 0 : index
    %c0_20 = arith.constant 0 : index
    %33 = vector.load %arg9[%c0_19, %c0_20] : memref<128x128xbf16, #tpu.memory_space<vmem>>, vector<128x128xbf16>
    %cst_21 = arith.constant dense<0.000000e+00> : vector<8x128xf32>
    %34 = tpu.matmul %32, %33, %cst_21 {dimension_numbers = #tpu.dot_dimension_numbers<[1], [0], [0], [1], [0, 0, 1, 1], [], []>} : vector<8x128xbf16>, vector<128x128xbf16>, vector<8x128xf32> -> vector<8x128xf32>
    %c0_22 = arith.constant 0 : index
    %c0_23 = arith.constant 0 : index
    %35 = vector.load %arg10[%c0_22, %c0_23] : memref<1x128xf32, #tpu.memory_space<vmem>>, vector<1x128xf32>
    %36 = vector.broadcast %35 : vector<1x128xf32> to vector<8x128xf32>
    %37 = arith.addf %34, %36 : vector<8x128xf32>
    %c0_24 = arith.constant 0 : index
    %c0_25 = arith.constant 0 : index
    %38 = vector.load %arg11[%c0_24, %c0_25] : memref<8x128xf32, #tpu.memory_space<vmem>>, vector<8x128xf32>
    tpu.vector_store %arg11[%c0_24, %c0_25], %37 {strides = array<i32>} : memref<8x128xf32, #tpu.memory_space<vmem>>, vector<8x128xf32>,
    return
  }
  func.func @transform_0(%arg0: i32) -> (i32, i32) {
    %c0_i32 = arith.constant 0 : i32
    %c0_i32_0 = arith.constant 0 : i32
    return %arg0, %c0_i32 : i32, i32
  }
  func.func @transform_1(%arg0: i32) -> (i32, i32) {
    %c0_i32 = arith.constant 0 : i32
    %c0_i32_0 = arith.constant 0 : i32
    return %arg0, %c0_i32 : i32, i32
  }
  func.func @transform_2(%arg0: i32) -> (i32, i32) {
    %c0_i32 = arith.constant 0 : i32
    %c0_i32_0 = arith.constant 0 : i32
    %c0_i32_1 = arith.constant 0 : i32
    return %c0_i32, %c0_i32_0 : i32, i32
  }
  func.func @transform_3(%arg0: i32) -> (i32, i32) {
    %c0_i32 = arith.constant 0 : i32
    %c0_i32_0 = arith.constant 0 : i32
    %c0_i32_1 = arith.constant 0 : i32
    return %c0_i32, %c0_i32_0 : i32, i32
  }
  func.func @transform_4(%arg0: i32) -> (i32, i32) {
    %c0_i32 = arith.constant 0 : i32
    %c0_i32_0 = arith.constant 0 : i32
    %c0_i32_1 = arith.constant 0 : i32
    return %c0_i32, %c0_i32_0 : i32, i32
  }
  func.func @transform_5(%arg0: i32) -> (i32, i32) {
    %c0_i32 = arith.constant 0 : i32
    %c0_i32_0 = arith.constant 0 : i32
    %c0_i32_1 = arith.constant 0 : i32
    return %c0_i32, %c0_i32_0 : i32, i32
  }
  func.func @transform_6(%arg0: i32) -> (i32, i32) {
    %c0_i32 = arith.constant 0 : i32
    %c0_i32_0 = arith.constant 0 : i32
    %c0_i32_1 = arith.constant 0 : i32
    return %c0_i32, %c0_i32_0 : i32, i32
  }
  func.func @transform_7(%arg0: i32) -> (i32, i32) {
    %c0_i32 = arith.constant 0 : i32
    %c0_i32_0 = arith.constant 0 : i32
    %c0_i32_1 = arith.constant 0 : i32
    return %c0_i32, %c0_i32_0 : i32, i32
  }
  func.func @transform_8(%arg0: i32) -> (i32, i32) {
    %c0_i32 = arith.constant 0 : i32
    %c0_i32_0 = arith.constant 0 : i32
    %c0_i32_1 = arith.constant 0 : i32
    return %c0_i32, %c0_i32_0 : i32, i32
  }
  func.func @transform_9(%arg0: i32) -> (i32, i32) {
    %c0_i32 = arith.constant 0 : i32
    %c0_i32_0 = arith.constant 0 : i32
    %c0_i32_1 = arith.constant 0 : i32
    return %c0_i32, %c0_i32_0 : i32, i32
  }
  func.func @transform_10(%arg0: i32) -> (i32, i32) {
    %c0_i32 = arith.constant 0 : i32
    %c0_i32_0 = arith.constant 0 : i32
    return %arg0, %c0_i32 : i32, i32
  }
}

</mosaic_0001>

<llo_original>
// kernel: tpu_custom_call.1
$region0: #{tpu_custom_call.1}
  #allocation0 [shape = 'u32[]', space=smem, size = 0x4, offset = 0x4, fixed_abs, tag = 'smem constant byte address 0x4 - core index']
  #allocation1 [shape = 'u32[144,128]{1,0:T(1,128)}', space=vmem, size = 0x12000, scoped, tag = 'internal scratch']
  %s0 = inlined_call_operand.hbm [shape: f32[16,128], index: 0, kind: input, shape index: {}]
  %s1 = inlined_call_operand.hbm [shape: f32[16,128], index: 1, kind: input, shape index: {}]
  %s2 = inlined_call_operand.hbm [shape: bf16[128,512], index: 2, kind: input, shape index: {}]
  %s3 = inlined_call_operand.vmem [shape: f32[1,512], index: 3, kind: input, shape index: {}]
  %s4 = inlined_call_operand.hbm [shape: bf16[128,128], index: 4, kind: input, shape index: {}]
  %s5 = inlined_call_operand.vmem [shape: f32[1,128], index: 5, kind: input, shape index: {}]
  %s6 = inlined_call_operand.hbm [shape: bf16[128,128], index: 6, kind: input, shape index: {}]
  %s7 = inlined_call_operand.vmem [shape: f32[1,128], index: 7, kind: input, shape index: {}]
  %s8 = inlined_call_operand.hbm [shape: bf16[128,128], index: 8, kind: input, shape index: {}]
  %s9 = inlined_call_operand.vmem [shape: f32[1,128], index: 9, kind: input, shape index: {}]
  %s10 = inlined_call_operand.hbm [shape: f32[16,128], index: 10, kind: output, shape index: {}]
  %s11 = sld [smem:[#allocation0]]
  $region97: #{tpu_custom_call.1} parent=0
    _
  %s13 = ssub.s32 1, %s11
  %s14 = scalar_select 0, %s13, %s11
  $region1: #{tpu_custom_call.1} parent=0
    #allocation2 [shape = 'u8[8192]{0}', space=vmem, size = 0x2000, scoped, tag = 'input window, operand 0']
    #allocation3 [shape = 's32[2]{0}', space=sflag, size = 0x8, scoped, tag = 'scoped memory for tpu_custom_call.1']
    #allocation4 [shape = 's32[2]{0}', space=sflag, size = 0x8, scoped, tag = 'scoped memory for tpu_custom_call.1']
    #allocation5 [shape = 'u8[8192]{0}', space=vmem, size = 0x2000, scoped, tag = 'input window, operand 1']
    #allocation6 [shape = 's32[2]{0}', space=sflag, size = 0x8, scoped, tag = 'scoped memory for tpu_custom_call.1']
    #allocation7 [shape = 'u8[131072]{0}', space=vmem, size = 0x20000, scoped, tag = 'input window, operand 2, single buffered']
    #allocation8 [shape = 'u8[32768]{0}', space=vmem, size = 0x8000, scoped, tag = 'input window, operand 4, single buffered']
    #allocation9 [shape = 's32[1]{0}', space=sflag, size = 0x4, scoped, tag = 'scoped memory for tpu_custom_call.1']
    #allocation10 [shape = 'u8[32768]{0}', space=vmem, size = 0x8000, scoped, tag = 'input window, operand 6, single buffered']
    #allocation11 [shape = 'u8[32768]{0}', space=vmem, size = 0x8000, scoped, tag = 'input window, operand 8, single buffered']
    #allocation12 [shape = 's32[1]{0}', space=sflag, size = 0x4, scoped, tag = 'scoped memory for tpu_custom_call.1']
    #allocation13 [shape = 'u8[8192]{0}', space=vmem, size = 0x2000, scoped, tag = 'output window, operand 0']
    %15 = vsyncpa [#allocation3], 0
    %s16 = scalar_lea.sflag [#allocation3], 1
    %17 = vsyncpa %s16, 0
    %18 = vsyncpa [#allocation6], 0
    %s19 = scalar_lea.sflag [#allocation6], 1
    %20 = vsyncpa %s19, 0
    %21 = vsyncpa [#allocation9], 0
    %22 = vsyncpa [#allocation12], 0
    %23 = vsyncpa [#allocation4], 0
    %s24 = scalar_lea.sflag [#allocation4], 1
    %25 = vsyncpa %s24, 0
    loop: start=0, step=1, limit=4
    $region2: #{tpu_custom_call.1} parent=1 // loop_pre_header
      _
    $region3: #{tpu_custom_call.1} parent=1 // loop_header
      %s27 = sphi 0, %s31
      %p28 = scmp.ge.s32.totalorder %s27, 4
      %s37 = sphi 0, %s39
      %s40 = sphi 0, %s37
      %s41 = sphi 0, %s40
      %s57 = sphi 0, %s41
      %s63 = sphi 0, %s65
      %s66 = sphi 0, %s63
      %s67 = sphi 0, %s66
      %s83 = sphi 0, %s67
      %s87 = sphi 0, %s87
      %s89 = sphi 0, %s87
      %s90 = sphi 0, %s89
      %s104 = sphi 0, %s90
      %s108 = sphi 0, %s108
      %s110 = sphi 0, %s108
      %s111 = sphi 0, %s110
      %s125 = sphi 0, %s111
      %s129 = sphi 0, %s129
      %s131 = sphi 0, %s129
      %s132 = sphi 0, %s131
      %s146 = sphi 0, %s132
      %s150 = sphi 0, %s150
      %s152 = sphi 0, %s150
      %s153 = sphi 0, %s152
      %s167 = sphi 0, %s153
      %s171 = sphi 0, %s171
      %s173 = sphi 0, %s171
      %s174 = sphi 0, %s173
      %s188 = sphi 0, %s174
      %s192 = sphi 0, %s192
      %s194 = sphi 0, %s192
      %s195 = sphi 0, %s194
      %s209 = sphi 0, %s195
      %s213 = sphi 0, %s213
      %s215 = sphi 0, %s213
      %s216 = sphi 0, %s215
      %s230 = sphi 0, %s216
      %s234 = sphi 0, %s234
      %s236 = sphi 0, %s234
      %s237 = sphi 0, %s236
      %s251 = sphi 0, %s237
      %s257 = sphi 0, %s259
      %s260 = sphi 0, %s257
      %s261 = sphi 0, %s260
      %s277 = sphi 0, %s261
    $region4: #{tpu_custom_call.1} parent=1 // loop_header_branch
      %30 = sbr.rel (%p28) target = $region8
    $region5: #{tpu_custom_call.1} parent=1 // loop_body
      %s32 = ssub.s32 %s27, 1
      %s33 = ssub.s32 %s27, 2
      %s34 = sadd.s32 %s27, 1
      %s35 = ssub.s32 %s27, %s34
      %p36 = scmp.eq.s32.totalorder %s35, 0
      %s38 = sadd.s32 %s37, 1
      %s39 = scalar_select %p36, %s37, %s38
      %p42 = pneg %p36
      %p43 = scmp.eq.s32.totalorder %s27, 1
      %p44 = por %p42, %p43
      %p45 = scmp.ne.s32.totalorder %s37, %s40
      %p46 = scmp.eq.s32.totalorder %s27, 0
      %p47 = por %p45, %p46
      %p48 = scmp.ne.s32.totalorder %s37, %s40
      %p49 = scmp.eq.s32.totalorder %s32, 1
      %p50 = por %p48, %p49
      %p51 = scmp.ne.s32.totalorder %s40, %s41
      %p52 = scmp.eq.s32.totalorder %s32, 0
      %p53 = por %p51, %p52
      %p54 = scmp.ne.s32.totalorder %s40, %s41
      %p55 = scmp.eq.s32.totalorder %s33, 1
      %p56 = por %p54, %p55
      %p58 = scmp.ne.s32.totalorder %s41, %s57
      %p59 = scmp.eq.s32.totalorder %s33, 0
      %p60 = por %p58, %p59
      %s61 = ssub.s32 %s27, %s34
      %p62 = scmp.eq.s32.totalorder %s61, 0
      %s64 = sadd.s32 %s63, 1
      %s65 = scalar_select %p62, %s63, %s64
      %p68 = pneg %p62
      %p69 = scmp.eq.s32.totalorder %s27, 1
      %p70 = por %p68, %p69
      %p71 = scmp.ne.s32.totalorder %s63, %s66
      %p72 = scmp.eq.s32.totalorder %s27, 0
      %p73 = por %p71, %p72
      %p74 = scmp.ne.s32.totalorder %s63, %s66
      %p75 = scmp.eq.s32.totalorder %s32, 1
      %p76 = por %p74, %p75
      %p77 = scmp.ne.s32.totalorder %s66, %s67
      %p78 = scmp.eq.s32.totalorder %s32, 0
      %p79 = por %p77, %p78
      %p80 = scmp.ne.s32.totalorder %s66, %s67
      %p81 = scmp.eq.s32.totalorder %s33, 1
      %p82 = por %p80, %p81
      %p84 = scmp.ne.s32.totalorder %s67, %s83
      %p85 = scmp.eq.s32.totalorder %s33, 0
      %p86 = por %p84, %p85
      %s88 = sadd.s32 %s87, 1
      %p91 = scmp.eq.s32.totalorder %s27, 1
      %p92 = scmp.ne.s32.totalorder %s87, %s89
      %p93 = scmp.eq.s32.totalorder %s27, 0
      %p94 = por %p92, %p93
      %p95 = scmp.ne.s32.totalorder %s87, %s89
      %p96 = scmp.eq.s32.totalorder %s32, 1
      %p97 = por %p95, %p96
      %p98 = scmp.ne.s32.totalorder %s89, %s90
      %p99 = scmp.eq.s32.totalorder %s32, 0
      %p100 = por %p98, %p99
      %p101 = scmp.ne.s32.totalorder %s89, %s90
      %p102 = scmp.eq.s32.totalorder %s33, 1
      %p103 = por %p101, %p102
      %p105 = scmp.ne.s32.totalorder %s90, %s104
      %p106 = scmp.eq.s32.totalorder %s33, 0
      %p107 = por %p105, %p106
      %s109 = sadd.s32 %s108, 1
      %p112 = scmp.eq.s32.totalorder %s27, 1
      %p113 = scmp.ne.s32.totalorder %s108, %s110
      %p114 = scmp.eq.s32.totalorder %s27, 0
      %p115 = por %p113, %p114
      %p116 = scmp.ne.s32.totalorder %s108, %s110
      %p117 = scmp.eq.s32.totalorder %s32, 1
      %p118 = por %p116, %p117
      %p119 = scmp.ne.s32.totalorder %s110, %s111
      %p120 = scmp.eq.s32.totalorder %s32, 0
      %p121 = por %p119, %p120
      %p122 = scmp.ne.s32.totalorder %s110, %s111
      %p123 = scmp.eq.s32.totalorder %s33, 1
      %p124 = por %p122, %p123
      %p126 = scmp.ne.s32.totalorder %s111, %s125
      %p127 = scmp.eq.s32.totalorder %s33, 0
      %p128 = por %p126, %p127
      %s130 = sadd.s32 %s129, 1
      %p133 = scmp.eq.s32.totalorder %s27, 1
      %p134 = scmp.ne.s32.totalorder %s129, %s131
      %p135 = scmp.eq.s32.totalorder %s27, 0
      %p136 = por %p134, %p135
      %p137 = scmp.ne.s32.totalorder %s129, %s131
      %p138 = scmp.eq.s32.totalorder %s32, 1
      %p139 = por %p137, %p138
      %p140 = scmp.ne.s32.totalorder %s131, %s132
      %p141 = scmp.eq.s32.totalorder %s32, 0
      %p142 = por %p140, %p141
      %p143 = scmp.ne.s32.totalorder %s131, %s132
      %p144 = scmp.eq.s32.totalorder %s33, 1
      %p145 = por %p143, %p144
      %p147 = scmp.ne.s32.totalorder %s132, %s146
      %p148 = scmp.eq.s32.totalorder %s33, 0
      %p149 = por %p147, %p148
      %s151 = sadd.s32 %s150, 1
      %p154 = scmp.eq.s32.totalorder %s27, 1
      %p155 = scmp.ne.s32.totalorder %s150, %s152
      %p156 = scmp.eq.s32.totalorder %s27, 0
      %p157 = por %p155, %p156
      %p158 = scmp.ne.s32.totalorder %s150, %s152
      %p159 = scmp.eq.s32.totalorder %s32, 1
      %p160 = por %p158, %p159
      %p161 = scmp.ne.s32.totalorder %s152, %s153
      %p162 = scmp.eq.s32.totalorder %s32, 0
      %p163 = por %p161, %p162
      %p164 = scmp.ne.s32.totalorder %s152, %s153
      %p165 = scmp.eq.s32.totalorder %s33, 1
      %p166 = por %p164, %p165
      %p168 = scmp.ne.s32.totalorder %s153, %s167
      %p169 = scmp.eq.s32.totalorder %s33, 0
      %p170 = por %p168, %p169
      %s172 = sadd.s32 %s171, 1
      %p175 = scmp.eq.s32.totalorder %s27, 1
      %p176 = scmp.ne.s32.totalorder %s171, %s173
      %p177 = scmp.eq.s32.totalorder %s27, 0
      %p178 = por %p176, %p177
      %p179 = scmp.ne.s32.totalorder %s171, %s173
      %p180 = scmp.eq.s32.totalorder %s32, 1
      %p181 = por %p179, %p180
      %p182 = scmp.ne.s32.totalorder %s173, %s174
      %p183 = scmp.eq.s32.totalorder %s32, 0
      %p184 = por %p182, %p183
      %p185 = scmp.ne.s32.totalorder %s173, %s174
      %p186 = scmp.eq.s32.totalorder %s33, 1
      %p187 = por %p185, %p186
      %p189 = scmp.ne.s32.totalorder %s174, %s188
      %p190 = scmp.eq.s32.totalorder %s33, 0
      %p191 = por %p189, %p190
      %s193 = sadd.s32 %s192, 1
      %p196 = scmp.eq.s32.totalorder %s27, 1
      %p197 = scmp.ne.s32.totalorder %s192, %s194
      %p198 = scmp.eq.s32.totalorder %s27, 0
      %p199 = por %p197, %p198
      %p200 = scmp.ne.s32.totalorder %s192, %s194
      %p201 = scmp.eq.s32.totalorder %s32, 1
      %p202 = por %p200, %p201
      %p203 = scmp.ne.s32.totalorder %s194, %s195
      %p204 = scmp.eq.s32.totalorder %s32, 0
      %p205 = por %p203, %p204
      %p206 = scmp.ne.s32.totalorder %s194, %s195
      %p207 = scmp.eq.s32.totalorder %s33, 1
      %p208 = por %p206, %p207
      %p210 = scmp.ne.s32.totalorder %s195, %s209
      %p211 = scmp.eq.s32.totalorder %s33, 0
      %p212 = por %p210, %p211
      %s214 = sadd.s32 %s213, 1
      %p217 = scmp.eq.s32.totalorder %s27, 1
      %p218 = scmp.ne.s32.totalorder %s213, %s215
      %p219 = scmp.eq.s32.totalorder %s27, 0
      %p220 = por %p218, %p219
      %p221 = scmp.ne.s32.totalorder %s213, %s215
      %p222 = scmp.eq.s32.totalorder %s32, 1
      %p223 = por %p221, %p222
      %p224 = scmp.ne.s32.totalorder %s215, %s216
      %p225 = scmp.eq.s32.totalorder %s32, 0
      %p226 = por %p224, %p225
      %p227 = scmp.ne.s32.totalorder %s215, %s216
      %p228 = scmp.eq.s32.totalorder %s33, 1
      %p229 = por %p227, %p228
      %p231 = scmp.ne.s32.totalorder %s216, %s230
      %p232 = scmp.eq.s32.totalorder %s33, 0
      %p233 = por %p231, %p232
      %s235 = sadd.s32 %s234, 1
      %p238 = scmp.eq.s32.totalorder %s27, 1
      %p239 = scmp.ne.s32.totalorder %s234, %s236
      %p240 = scmp.eq.s32.totalorder %s27, 0
      %p241 = por %p239, %p240
      %p242 = scmp.ne.s32.totalorder %s234, %s236
      %p243 = scmp.eq.s32.totalorder %s32, 1
      %p244 = por %p242, %p243
      %p245 = scmp.ne.s32.totalorder %s236, %s237
      %p246 = scmp.eq.s32.totalorder %s32, 0
      %p247 = por %p245, %p246
      %p248 = scmp.ne.s32.totalorder %s236, %s237
      %p249 = scmp.eq.s32.totalorder %s33, 1
      %p250 = por %p248, %p249
      %p252 = scmp.ne.s32.totalorder %s237, %s251
      %p253 = scmp.eq.s32.totalorder %s33, 0
      %p254 = por %p252, %p253
      %s255 = ssub.s32 %s27, %s34
      %p256 = scmp.eq.s32.totalorder %s255, 0
      %s258 = sadd.s32 %s257, 1
      %s259 = scalar_select %p256, %s257, %s258
      %p262 = pneg %p256
      %p263 = scmp.eq.s32.totalorder %s27, 1
      %p264 = por %p262, %p263
      %p265 = scmp.ne.s32.totalorder %s257, %s260
      %p266 = scmp.eq.s32.totalorder %s27, 0
      %p267 = por %p265, %p266
      %p268 = scmp.ne.s32.totalorder %s257, %s260
      %p269 = scmp.eq.s32.totalorder %s32, 1
      %p270 = por %p268, %p269
      %p271 = scmp.ne.s32.totalorder %s260, %s261
      %p272 = scmp.eq.s32.totalorder %s32, 0
      %p273 = por %p271, %p272
      %p274 = scmp.ne.s32.totalorder %s260, %s261
      %p275 = scmp.eq.s32.totalorder %s33, 1
      %p276 = por %p274, %p275
      %p278 = scmp.ne.s32.totalorder %s261, %s277
      %p279 = scmp.eq.s32.totalorder %s33, 0
      %p280 = por %p278, %p279
      %p281 = scmp.le.s32.totalorder 1, %s27
      %p282 = scmp.lt.s32.totalorder %s27, 3
      %p283 = pnand %p281, %p282
      %p284 = pneg %p283
      // Predicated region
      $region9: #{tpu_custom_call.1} parent=5 // pred_check
        _
      $region10: #{tpu_custom_call.1} parent=5 // pred_check_branch
        %286 = sbr.rel (%p283) target = $region12
      $region11: #{tpu_custom_call.1} parent=5 // pred_region
        %s287 = ssub.s32 %s27, 1
        // Predicated region
        $region13: #{tpu_custom_call.1} parent=11 // pred_check
          %p288 = pneg %p100
        $region14: #{tpu_custom_call.1} parent=11 // pred_check_branch
          %290 = sbr.rel (%p288) target = $region16
        $region15: #{tpu_custom_call.1} parent=11 // pred_region
          %s292 = ssub.s32 4096, 4096
          %293 = vsyncadd [#allocation6], %s292
          %s294 = sshll.u32 [#allocation7], 4
          %s295 = int_to_ptr.vmem [resolvable:$true] %s294
          %300 = dma.hbm_to_vmem [thread:$0]  %s2, 4096, %s295, [#allocation6], 256, 256, 16
        $region16: #{tpu_custom_call.1} parent=11 // pred_fallthru
          _
        // Predicated region
        $region17: #{tpu_custom_call.1} parent=11 // pred_check
          %p301 = pneg %p121
        $region18: #{tpu_custom_call.1} parent=11 // pred_check_branch
          %303 = sbr.rel (%p301) target = $region20
        $region19: #{tpu_custom_call.1} parent=11 // pred_region
          _
        $region20: #{tpu_custom_call.1} parent=11 // pred_fallthru
          _
        // Predicated region
        $region21: #{tpu_custom_call.1} parent=11 // pred_check
          %p304 = pneg %p142
        $region22: #{tpu_custom_call.1} parent=11 // pred_check_branch
          %306 = sbr.rel (%p304) target = $region24
        $region23: #{tpu_custom_call.1} parent=11 // pred_region
          %s308 = ssub.s32 1024, 1024
          %309 = vsyncadd [#allocation9], %s308
          %s310 = sshll.u32 [#allocation8], 4
          %s311 = int_to_ptr.vmem [resolvable:$true] %s310
          %316 = dma.hbm_to_vmem [thread:$0]  %s4, 1024, %s311, [#allocation9], 64, 64, 4
        $region24: #{tpu_custom_call.1} parent=11 // pred_fallthru
          _
        // Predicated region
        $region25: #{tpu_custom_call.1} parent=11 // pred_check
          %p317 = pneg %p163
        $region26: #{tpu_custom_call.1} parent=11 // pred_check_branch
          %319 = sbr.rel (%p317) target = $region28
        $region27: #{tpu_custom_call.1} parent=11 // pred_region
          _
        $region28: #{tpu_custom_call.1} parent=11 // pred_fallthru
          _
        // Predicated region
        $region29: #{tpu_custom_call.1} parent=11 // pred_check
          %p320 = pneg %p184
        $region30: #{tpu_custom_call.1} parent=11 // pred_check_branch
          %322 = sbr.rel (%p320) target = $region32
        $region31: #{tpu_custom_call.1} parent=11 // pred_region
          %s324 = ssub.s32 1024, 1024
          %325 = vsyncadd [#allocation9], %s324
          %s326 = sshll.u32 [#allocation10], 4
          %s327 = int_to_ptr.vmem [resolvable:$true] %s326
          %332 = dma.hbm_to_vmem [thread:$0]  %s6, 1024, %s327, [#allocation9], 64, 64, 4
        $region32: #{tpu_custom_call.1} parent=11 // pred_fallthru
          _
        // Predicated region
        $region33: #{tpu_custom_call.1} parent=11 // pred_check
          %p333 = pneg %p205
        $region34: #{tpu_custom_call.1} parent=11 // pred_check_branch
          %335 = sbr.rel (%p333) target = $region36
        $region35: #{tpu_custom_call.1} parent=11 // pred_region
          _
        $region36: #{tpu_custom_call.1} parent=11 // pred_fallthru
          _
        // Predicated region
        $region37: #{tpu_custom_call.1} parent=11 // pred_check
          %p336 = pneg %p226
        $region38: #{tpu_custom_call.1} parent=11 // pred_check_branch
          %338 = sbr.rel (%p336) target = $region40
        $region39: #{tpu_custom_call.1} parent=11 // pred_region
          %s340 = ssub.s32 1024, 1024
          %341 = vsyncadd [#allocation12], %s340
          %s342 = sshll.u32 [#allocation11], 4
          %s343 = int_to_ptr.vmem [resolvable:$true] %s342
          %348 = dma.hbm_to_vmem [thread:$0]  %s8, 1024, %s343, [#allocation12], 64, 64, 4
        $region40: #{tpu_custom_call.1} parent=11 // pred_fallthru
          _
        // Predicated region
        $region41: #{tpu_custom_call.1} parent=11 // pred_check
          %p349 = pneg %p247
        $region42: #{tpu_custom_call.1} parent=11 // pred_check_branch
          %351 = sbr.rel (%p349) target = $region44
        $region43: #{tpu_custom_call.1} parent=11 // pred_region
          _
        $region44: #{tpu_custom_call.1} parent=11 // pred_fallthru
          _
      $region12: #{tpu_custom_call.1} parent=5 // pred_fallthru
        _
      %p352 = scmp.lt.s32.totalorder %s27, 2
      // Predicated region
      $region45: #{tpu_custom_call.1} parent=5 // pred_check
        %p353 = pneg %p352
      $region46: #{tpu_custom_call.1} parent=5 // pred_check_branch
        %355 = sbr.rel (%p353) target = $region48
      $region47: #{tpu_custom_call.1} parent=5 // pred_region
        // Predicated region
        $region49: #{tpu_custom_call.1} parent=47 // pred_check
          %p356 = pneg %p47
        $region50: #{tpu_custom_call.1} parent=47 // pred_check_branch
          %358 = sbr.rel (%p356) target = $region52
        $region51: #{tpu_custom_call.1} parent=47 // pred_region
          %s359 = sand.u32 %s37, 1
          %s360 = scalar_lea.sflag [#allocation3], %s359
          %s361 = sand.u32 %s37, 1
          %s362 = smul.addr %s361, 8
          %s363 = scalar_lea.vmem [#allocation2], %s362
          %s365 = ssub.s32 128, 128
          %366 = vsyncadd %s360, %s365
          %s367 = smul.addr %s27, 128
          %s368 = scalar_lea.hbm %s0, %s367
          %s370 = sshll.u32 %s363, 4
          %s371 = int_to_ptr.vmem [resolvable:$true] %s370
          %373 = dma.hbm_to_vmem [thread:$0]  %s368, 128, %s371, %s360
        $region52: #{tpu_custom_call.1} parent=47 // pred_fallthru
          _
        // Predicated region
        $region53: #{tpu_custom_call.1} parent=47 // pred_check
          %p374 = pneg %p73
        $region54: #{tpu_custom_call.1} parent=47 // pred_check_branch
          %376 = sbr.rel (%p374) target = $region56
        $region55: #{tpu_custom_call.1} parent=47 // pred_region
          %s377 = sand.u32 %s27, 1
          %s378 = scalar_lea.sflag [#allocation6], %s377
          %s379 = sand.u32 %s63, 1
          %s380 = smul.addr %s379, 8
          %s381 = scalar_lea.vmem [#allocation5], %s380
          %s383 = ssub.s32 128, 128
          %384 = vsyncadd %s378, %s383
          %s385 = smul.addr %s27, 128
          %s386 = scalar_lea.hbm %s1, %s385
          %s388 = sshll.u32 %s381, 4
          %s389 = int_to_ptr.vmem [resolvable:$true] %s388
          %391 = dma.hbm_to_vmem [thread:$0]  %s386, 128, %s389, %s378
        $region56: #{tpu_custom_call.1} parent=47 // pred_fallthru
          _
      $region48: #{tpu_custom_call.1} parent=5 // pred_fallthru
        _
      %p392 = scmp.le.s32.totalorder 1, %s27
      %p393 = scmp.lt.s32.totalorder %s27, 3
      %p394 = pnand %p392, %p393
      %p395 = pneg %p394
      // Predicated region
      $region57: #{tpu_custom_call.1} parent=5 // pred_check
        _
      $region58: #{tpu_custom_call.1} parent=5 // pred_check_branch
        %397 = sbr.rel (%p394) target = $region60
      $region59: #{tpu_custom_call.1} parent=5 // pred_region
        %s398 = ssub.s32 %s27, 1
        %s399 = sand.u32 %s40, 1
        %s400 = scalar_lea.sflag [#allocation3], %s399
        %s401 = sand.u32 %s40, 1
        %s402 = smul.addr %s401, 8
        %s403 = scalar_lea.vmem [#allocation2], %s402
        // Predicated region
        $region61: #{tpu_custom_call.1} parent=59 // pred_check
          %p404 = pneg %p53
        $region62: #{tpu_custom_call.1} parent=59 // pred_check_branch
          %406 = sbr.rel (%p404) target = $region64
        $region63: #{tpu_custom_call.1} parent=59 // pred_region
          %407 = dma.done %s400, 128
        $region64: #{tpu_custom_call.1} parent=59 // pred_fallthru
          _
        %s408 = sand.u32 %s32, 1
        %s409 = scalar_lea.sflag [#allocation6], %s408
        %s410 = sand.u32 %s66, 1
        %s411 = smul.addr %s410, 8
        %s412 = scalar_lea.vmem [#allocation5], %s411
        // Predicated region
        $region65: #{tpu_custom_call.1} parent=59 // pred_check
          %p413 = pneg %p79
        $region66: #{tpu_custom_call.1} parent=59 // pred_check_branch
          %415 = sbr.rel (%p413) target = $region68
        $region67: #{tpu_custom_call.1} parent=59 // pred_region
          %416 = dma.done %s409, 128
        $region68: #{tpu_custom_call.1} parent=59 // pred_fallthru
          _
        // Predicated region
        $region69: #{tpu_custom_call.1} parent=59 // pred_check
          %p417 = pneg %p100
        $region70: #{tpu_custom_call.1} parent=59 // pred_check_branch
          %419 = sbr.rel (%p417) target = $region72
        $region71: #{tpu_custom_call.1} parent=59 // pred_region
          %420 = dma.done [#allocation6], 4096
        $region72: #{tpu_custom_call.1} parent=59 // pred_fallthru
          _
        // Predicated region
        $region73: #{tpu_custom_call.1} parent=59 // pred_check
          %p421 = pneg %p142
        $region74: #{tpu_custom_call.1} parent=59 // pred_check_branch
          %423 = sbr.rel (%p421) target = $region76
        $region75: #{tpu_custom_call.1} parent=59 // pred_region
          %424 = dma.done [#allocation9], 1024
        $region76: #{tpu_custom_call.1} parent=59 // pred_fallthru
          _
        // Predicated region
        $region77: #{tpu_custom_call.1} parent=59 // pred_check
          %p425 = pneg %p184
        $region78: #{tpu_custom_call.1} parent=59 // pred_check_branch
          %427 = sbr.rel (%p425) target = $region80
        $region79: #{tpu_custom_call.1} parent=59 // pred_region
          %428 = dma.done [#allocation9], 1024
        $region80: #{tpu_custom_call.1} parent=59 // pred_fallthru
          _
        // Predicated region
        $region81: #{tpu_custom_call.1} parent=59 // pred_check
          %p429 = pneg %p226
        $region82: #{tpu_custom_call.1} parent=59 // pred_check_branch
          %431 = sbr.rel (%p429) target = $region84
        $region83: #{tpu_custom_call.1} parent=59 // pred_region
          %432 = dma.done [#allocation12], 1024
        $region84: #{tpu_custom_call.1} parent=59 // pred_fallthru
          _
        %s433 = sand.u32 %s40, 1
        %s434 = scalar_lea.sflag [#allocation3], %s433
        %s435 = sand.u32 %s40, 1
        %s436 = smul.addr %s435, 8
        %s437 = scalar_lea.vmem [#allocation2], %s436
        %p438 = pneg %p53
        %p439 = pneg %p50
        %s440 = sand.u32 %s32, 1
        %s441 = scalar_lea.sflag [#allocation6], %s440
        %s442 = sand.u32 %s66, 1
        %s443 = smul.addr %s442, 8
        %s444 = scalar_lea.vmem [#allocation5], %s443
        %p445 = pneg %p79
        %p446 = pneg %p76
        %p447 = pneg %p100
        %p448 = pneg %p97
        %p449 = pneg %p121
        %p450 = pneg %p118
        %p451 = pneg %p142
        %p452 = pneg %p139
        %p453 = pneg %p163
        %p454 = pneg %p160
        %p455 = pneg %p184
        %p456 = pneg %p181
        %p457 = pneg %p205
        %p458 = pneg %p202
        %p459 = pneg %p226
        %p460 = pneg %p223
        %p461 = pneg %p247
        %p462 = pneg %p244
        %p463 = pneg %p273
        %p464 = pneg %p270
        %s465 = sand.u32 %s260, 1
        %s466 = scalar_lea.sflag [#allocation4], %s465
        %s467 = sand.u32 %s260, 1
        %s468 = smul.addr %s467, 8
        %s469 = scalar_lea.vmem [#allocation13], %s468
        %v471 = vld [vmem:[%s403] sm:$0xff]
        %v472 = vld [vmem:[%s412] sm:$0xff]
        %v473 = vpack.c.bf16 %v472, %v472
        %v474 = vld [vmem:[#allocation7] sm:$0xff]
        %v475 = vld [vmem:[#allocation7 + $0x8] sm:$0xff]
        %v476 = vld [vmem:[#allocation7 + $0x10] sm:$0xff]
        %v477 = vld [vmem:[#allocation7 + $0x18] sm:$0xff]
        %v478 = vld [vmem:[#allocation7 + $0x20] sm:$0xff]
        %v479 = vld [vmem:[#allocation7 + $0x28] sm:$0xff]
        %v480 = vld [vmem:[#allocation7 + $0x30] sm:$0xff]
        %v481 = vld [vmem:[#allocation7 + $0x38] sm:$0xff]
        %v482 = vld [vmem:[#allocation7 + $0x40] sm:$0xff]
        %v483 = vld [vmem:[#allocation7 + $0x48] sm:$0xff]
        %v484 = vld [vmem:[#allocation7 + $0x50] sm:$0xff]
        %v485 = vld [vmem:[#allocation7 + $0x58] sm:$0xff]
        %v486 = vld [vmem:[#allocation7 + $0x60] sm:$0xff]
        %v487 = vld [vmem:[#allocation7 + $0x68] sm:$0xff]
        %v488 = vld [vmem:[#allocation7 + $0x70] sm:$0xff]
        %v489 = vld [vmem:[#allocation7 + $0x78] sm:$0xff]
        %v490 = vld [vmem:[#allocation7 + $0x80] sm:$0xff]
        %v491 = vld [vmem:[#allocation7 + $0x88] sm:$0xff]
        %v492 = vld [vmem:[#allocation7 + $0x90] sm:$0xff]
        %v493 = vld [vmem:[#allocation7 + $0x98] sm:$0xff]
        %v494 = vld [vmem:[#allocation7 + $0xa0] sm:$0xff]
        %v495 = vld [vmem:[#allocation7 + $0xa8] sm:$0xff]
        %v496 = vld [vmem:[#allocation7 + $0xb0] sm:$0xff]
        %v497 = vld [vmem:[#allocation7 + $0xb8] sm:$0xff]
        %v498 = vld [vmem:[#allocation7 + $0xc0] sm:$0xff]
        %v499 = vld [vmem:[#allocation7 + $0xc8] sm:$0xff]
        %v500 = vld [vmem:[#allocation7 + $0xd0] sm:$0xff]
        %v501 = vld [vmem:[#allocation7 + $0xd8] sm:$0xff]
        %v502 = vld [vmem:[#allocation7 + $0xe0] sm:$0xff]
        %v503 = vld [vmem:[#allocation7 + $0xe8] sm:$0xff]
        %v504 = vld [vmem:[#allocation7 + $0xf0] sm:$0xff]
        %v505 = vld [vmem:[#allocation7 + $0xf8] sm:$0xff]
        %v506 = vld [vmem:[%s3] sm:$0xf]
        %v508 = vlaneseq
        %v509 = vshrl.u32 %v508, 7
        %v510 = vsub.s32 0, %v509
        %v511 = vrot.slane %v506, %v510
        %v512 = vlaneseq
        %v513 = vshrl.u32 %v512, 7
        %v514 = vsub.s32 1, %v513
        %v515 = vrot.slane %v506, %v514
        %v516 = vlaneseq
        %v517 = vshrl.u32 %v516, 7
        %v518 = vsub.s32 2, %v517
        %v519 = vrot.slane %v506, %v518
        %v520 = vlaneseq
        %v521 = vshrl.u32 %v520, 7
        %v522 = vsub.s32 3, %v521
        %v523 = vrot.slane %v506, %v522
        %v560 = vunpack.c.l.b16 %v474
        %v561 = vunpack.c.h.b16 %v474
        %v562 = vunpack.c.l.b16 %v475
        %v563 = vunpack.c.h.b16 %v475
        %v564 = vunpack.c.l.b16 %v476
        %v565 = vunpack.c.h.b16 %v476
        %v566 = vunpack.c.l.b16 %v477
        %v567 = vunpack.c.h.b16 %v477
        %v568 = vunpack.c.l.b16 %v478
        %v569 = vunpack.c.h.b16 %v478
        %v570 = vunpack.c.l.b16 %v479
        %v571 = vunpack.c.h.b16 %v479
        %v572 = vunpack.c.l.b16 %v480
        %v573 = vunpack.c.h.b16 %v480
        %v574 = vunpack.c.l.b16 %v481
        %v575 = vunpack.c.h.b16 %v481
        %v576 = vunpack.c.l.b16 %v482
        %v577 = vunpack.c.h.b16 %v482
        %v578 = vunpack.c.l.b16 %v483
        %v579 = vunpack.c.h.b16 %v483
        %v580 = vunpack.c.l.b16 %v484
        %v581 = vunpack.c.h.b16 %v484
        %v582 = vunpack.c.l.b16 %v485
        %v583 = vunpack.c.h.b16 %v485
        %v584 = vunpack.c.l.b16 %v486
        %v585 = vunpack.c.h.b16 %v486
        %v586 = vunpack.c.l.b16 %v487
        %v587 = vunpack.c.h.b16 %v487
        %v588 = vunpack.c.l.b16 %v488
        %v589 = vunpack.c.h.b16 %v488
        %v590 = vunpack.c.l.b16 %v489
        %v591 = vunpack.c.h.b16 %v489
        %v592 = vunpack.c.l.b16 %v490
        %v593 = vunpack.c.h.b16 %v490
        %v594 = vunpack.c.l.b16 %v491
        %v595 = vunpack.c.h.b16 %v491
        %v596 = vunpack.c.l.b16 %v492
        %v597 = vunpack.c.h.b16 %v492
        %v598 = vunpack.c.l.b16 %v493
        %v599 = vunpack.c.h.b16 %v493
        %v600 = vunpack.c.l.b16 %v494
        %v601 = vunpack.c.h.b16 %v494
        %v602 = vunpack.c.l.b16 %v495
        %v603 = vunpack.c.h.b16 %v495
        %v604 = vunpack.c.l.b16 %v496
        %v605 = vunpack.c.h.b16 %v496
        %v606 = vunpack.c.l.b16 %v497
        %v607 = vunpack.c.h.b16 %v497
        %v608 = vunpack.c.l.b16 %v498
        %v609 = vunpack.c.h.b16 %v498
        %v610 = vunpack.c.l.b16 %v499
        %v611 = vunpack.c.h.b16 %v499
        %v612 = vunpack.c.l.b16 %v500
        %v613 = vunpack.c.h.b16 %v500
        %v614 = vunpack.c.l.b16 %v501
        %v615 = vunpack.c.h.b16 %v501
        %v616 = vunpack.c.l.b16 %v502
        %v617 = vunpack.c.h.b16 %v502
        %v618 = vunpack.c.l.b16 %v503
        %v619 = vunpack.c.h.b16 %v503
        %v620 = vunpack.c.l.b16 %v504
        %v621 = vunpack.c.h.b16 %v504
        %v622 = vunpack.c.l.b16 %v505
        %v623 = vunpack.c.h.b16 %v505
        %v624 = vpack.c.b16 %v564, %v560
        %v625 = vpack.c.b16 %v565, %v561
        %v626 = vpack.c.b16 %v566, %v562
        %v627 = vpack.c.b16 %v567, %v563
        %v628 = vpack.c.b16 %v572, %v568
        %v629 = vpack.c.b16 %v573, %v569
        %v630 = vpack.c.b16 %v574, %v570
        %v631 = vpack.c.b16 %v575, %v571
        %v632 = vpack.c.b16 %v580, %v576
        %v633 = vpack.c.b16 %v581, %v577
        %v634 = vpack.c.b16 %v582, %v578
        %v635 = vpack.c.b16 %v583, %v579
        %v636 = vpack.c.b16 %v588, %v584
        %v637 = vpack.c.b16 %v589, %v585
        %v638 = vpack.c.b16 %v590, %v586
        %v639 = vpack.c.b16 %v591, %v587
        %v640 = vpack.c.b16 %v596, %v592
        %v641 = vpack.c.b16 %v597, %v593
        %v642 = vpack.c.b16 %v598, %v594
        %v643 = vpack.c.b16 %v599, %v595
        %v644 = vpack.c.b16 %v604, %v600
        %v645 = vpack.c.b16 %v605, %v601
        %v646 = vpack.c.b16 %v606, %v602
        %v647 = vpack.c.b16 %v607, %v603
        %v648 = vpack.c.b16 %v612, %v608
        %v649 = vpack.c.b16 %v613, %v609
        %v650 = vpack.c.b16 %v614, %v610
        %v651 = vpack.c.b16 %v615, %v611
        %v652 = vpack.c.b16 %v620, %v616
        %v653 = vpack.c.b16 %v621, %v617
        %v654 = vpack.c.b16 %v622, %v618
        %v655 = vpack.c.b16 %v623, %v619
        %688 = vmatprep.subr.bf16.mxu0 %v653
        %689 = vmatpush1.bf16.msra.mxu0 %v652
        %690 = vmatprep.subr.bf16.mxu0 %v649
        %691 = vmatpush1.bf16.msra.mxu0 %v648
        %692 = vmatprep.subr.bf16.mxu0 %v645
        %693 = vmatpush1.bf16.msra.mxu0 %v644
        %694 = vmatprep.subr.bf16.mxu0 %v641
        %695 = vmatpush1.bf16.msra.mxu0 %v640
        %696 = vmatprep.subr.bf16.mxu0 %v637
        %697 = vmatpush1.bf16.msra.mxu0 %v636
        %698 = vmatprep.subr.bf16.mxu0 %v633
        %699 = vmatpush1.bf16.msra.mxu0 %v632
        %700 = vmatprep.subr.bf16.mxu0 %v629
        %701 = vmatpush1.bf16.msra.mxu0 %v628
        %702 = vmatprep.subr.bf16.mxu0 %v625
        %703 = vmatpush1.bf16.msra.mxu0 %v624
        %704 = vmatprep.subr.bf16.mxu0 0
        %705 = vmatpush2.bf16.msra.mxu0 0
        %706 = vmatprep.subr.bf16.mxu0 0
        %707 = vmatpush2.bf16.msra.mxu0 0
        %708 = vmatprep.subr.bf16.mxu0 0
        %709 = vmatpush2.bf16.msra.mxu0 0
        %710 = vmatprep.subr.bf16.mxu0 0
        %711 = vmatpush2.bf16.msra.mxu0 0
        %712 = vmatprep.subr.bf16.mxu0 0
        %713 = vmatpush2.bf16.msra.mxu0 0
        %714 = vmatprep.subr.bf16.mxu0 0
        %715 = vmatpush2.bf16.msra.mxu0 0
        %716 = vmatprep.subr.bf16.mxu0 0
        %717 = vmatpush2.bf16.msra.mxu0 0
        %718 = vmatprep.subr.bf16.mxu0 0
        %719 = vmatpush2.bf16.msra.mxu0 0
        %720 = vmatprep.mubr.bf16.mxu0 0
        %721 = vmatmul.mubr.bf16.gmra.mxu0 %v473
        %v722 = vpop.f32.mrf.mxu0
        %v723 = vadd.f32 %v511, %v722
        %v724 = vpop.f32.mrf.mxu0
        %v725 = vadd.f32 %v515, %v724
        %v726 = vpop.f32.mrf.mxu0
        %v727 = vpop.f32.mrf.mxu0
        %728 = vdwg.mxu0
        %729 = vmatprep.subr.bf16.mxu0 %v655
        %730 = vmatpush1.bf16.msra.mxu0 %v654
        %731 = vmatprep.subr.bf16.mxu0 %v651
        %732 = vmatpush1.bf16.msra.mxu0 %v650
        %733 = vmatprep.subr.bf16.mxu0 %v647
        %734 = vmatpush1.bf16.msra.mxu0 %v646
        %735 = vmatprep.subr.bf16.mxu0 %v643
        %736 = vmatpush1.bf16.msra.mxu0 %v642
        %737 = vmatprep.subr.bf16.mxu0 %v639
        %738 = vmatpush1.bf16.msra.mxu0 %v638
        %739 = vmatprep.subr.bf16.mxu0 %v635
        %740 = vmatpush1.bf16.msra.mxu0 %v634
        %741 = vmatprep.subr.bf16.mxu0 %v631
        %742 = vmatpush1.bf16.msra.mxu0 %v630
        %743 = vmatprep.subr.bf16.mxu0 %v627
        %744 = vmatpush1.bf16.msra.mxu0 %v626
        %745 = vmatprep.subr.bf16.mxu0 0
        %746 = vmatpush2.bf16.msra.mxu0 0
        %747 = vmatprep.subr.bf16.mxu0 0
        %748 = vmatpush2.bf16.msra.mxu0 0
        %749 = vmatprep.subr.bf16.mxu0 0
        %750 = vmatpush2.bf16.msra.mxu0 0
        %751 = vmatprep.subr.bf16.mxu0 0
        %752 = vmatpush2.bf16.msra.mxu0 0
        %753 = vmatprep.subr.bf16.mxu0 0
        %754 = vmatpush2.bf16.msra.mxu0 0
        %755 = vmatprep.subr.bf16.mxu0 0
        %756 = vmatpush2.bf16.msra.mxu0 0
        %757 = vmatprep.subr.bf16.mxu0 0
        %758 = vmatpush2.bf16.msra.mxu0 0
        %759 = vmatprep.subr.bf16.mxu0 0
        %760 = vmatpush2.bf16.msra.mxu0 0
        %761 = vmatprep.mubr.bf16.mxu0 0
        %762 = vmatmul.mubr.bf16.gmra.mxu0 %v473
        %v763 = vpop.f32.mrf.mxu0
        %v764 = vadd.f32 %v519, %v763
        %v765 = vpop.f32.mrf.mxu0
        %v766 = vadd.f32 %v523, %v765
        %v767 = vpop.f32.mrf.mxu0
        %v768 = vpop.f32.mrf.mxu0
        %769 = vdwg.mxu0
        %v770 = vmul.f32 %v723, %v471
        %v771 = vadd.f32 %v770, %v725
        %v772 = vmul.f32 %v764, %v771
        %v773 = vadd.f32 %v772, %v766
        %v774 = vpack.c.bf16 %v773, %v773
        %v775 = vld [vmem:[#allocation8] sm:$0xf]
        %v776 = vld [vmem:[#allocation8 + $0x4] sm:$0xf]
        %v777 = vld [vmem:[#allocation8 + $0x8] sm:$0xf]
        %v778 = vld [vmem:[#allocation8 + $0xc] sm:$0xf]
        %v779 = vld [vmem:[#allocation8 + $0x10] sm:$0xf]
        %v780 = vld [vmem:[#allocation8 + $0x14] sm:$0xf]
        %v781 = vld [vmem:[#allocation8 + $0x18] sm:$0xf]
        %v782 = vld [vmem:[#allocation8 + $0x1c] sm:$0xf]
        %v783 = vld [vmem:[#allocation8 + $0x20] sm:$0xf]
        %v784 = vld [vmem:[#allocation8 + $0x24] sm:$0xf]
        %v785 = vld [vmem:[#allocation8 + $0x28] sm:$0xf]
        %v786 = vld [vmem:[#allocation8 + $0x2c] sm:$0xf]
        %v787 = vld [vmem:[#allocation8 + $0x30] sm:$0xf]
        %v788 = vld [vmem:[#allocation8 + $0x34] sm:$0xf]
        %v789 = vld [vmem:[#allocation8 + $0x38] sm:$0xf]
        %v790 = vld [vmem:[#allocation8 + $0x3c] sm:$0xf]
        %v791 = vld [vmem:[%s5] sm:$0x1]
        %v793 = vlaneseq
        %v794 = vshrl.u32 %v793, 7
        %v795 = vsub.s32 0, %v794
        %v796 = vrot.slane %v791, %v795
        %v814 = vunpack.c.l.b16 %v775
        %v815 = vunpack.c.l.b16 %v776
        %v816 = vunpack.c.l.b16 %v777
        %v817 = vunpack.c.l.b16 %v778
        %v818 = vunpack.c.l.b16 %v779
        %v819 = vunpack.c.l.b16 %v780
        %v820 = vunpack.c.l.b16 %v781
        %v821 = vunpack.c.l.b16 %v782
        %v822 = vunpack.c.l.b16 %v783
        %v823 = vunpack.c.l.b16 %v784
        %v824 = vunpack.c.l.b16 %v785
        %v825 = vunpack.c.l.b16 %v786
        %v826 = vunpack.c.l.b16 %v787
        %v827 = vunpack.c.l.b16 %v788
        %v828 = vunpack.c.l.b16 %v789
        %v829 = vunpack.c.l.b16 %v790
        %v830 = vpack.c.b16 %v815, %v814
        %v831 = vpack.c.b16 %v817, %v816
        %v832 = vpack.c.b16 %v819, %v818
        %v833 = vpack.c.b16 %v821, %v820
        %v834 = vpack.c.b16 %v823, %v822
        %v835 = vpack.c.b16 %v825, %v824
        %v836 = vpack.c.b16 %v827, %v826
        %v837 = vpack.c.b16 %v829, %v828
        %846 = vmatprep.subr.bf16.mxu0 0
        %847 = vmatpush1.bf16.msra.mxu0 %v837
        %848 = vmatprep.subr.bf16.mxu0 0
        %849 = vmatpush1.bf16.msra.mxu0 %v836
        %850 = vmatprep.subr.bf16.mxu0 0
        %851 = vmatpush1.bf16.msra.mxu0 %v835
        %852 = vmatprep.subr.bf16.mxu0 0
        %853 = vmatpush1.bf16.msra.mxu0 %v834
        %854 = vmatprep.subr.bf16.mxu0 0
        %855 = vmatpush1.bf16.msra.mxu0 %v833
        %856 = vmatprep.subr.bf16.mxu0 0
        %857 = vmatpush1.bf16.msra.mxu0 %v832
        %858 = vmatprep.subr.bf16.mxu0 0
        %859 = vmatpush1.bf16.msra.mxu0 %v831
        %860 = vmatprep.subr.bf16.mxu0 0
        %861 = vmatpush1.bf16.msra.mxu0 %v830
        %862 = vmatprep.subr.bf16.mxu0 0
        %863 = vmatpush2.bf16.msra.mxu0 0
        %864 = vmatprep.subr.bf16.mxu0 0
        %865 = vmatpush2.bf16.msra.mxu0 0
        %866 = vmatprep.subr.bf16.mxu0 0
        %867 = vmatpush2.bf16.msra.mxu0 0
        %868 = vmatprep.subr.bf16.mxu0 0
        %869 = vmatpush2.bf16.msra.mxu0 0
        %870 = vmatprep.subr.bf16.mxu0 0
        %871 = vmatpush2.bf16.msra.mxu0 0
        %872 = vmatprep.subr.bf16.mxu0 0
        %873 = vmatpush2.bf16.msra.mxu0 0
        %874 = vmatprep.subr.bf16.mxu0 0
        %875 = vmatpush2.bf16.msra.mxu0 0
        %876 = vmatprep.subr.bf16.mxu0 0
        %877 = vmatpush2.bf16.msra.mxu0 0
        %878 = vmatprep.mubr.bf16.mxu0 0
        %879 = vmatmul.mubr.bf16.gmra.mxu0 %v774
        %v880 = vpop.f32.mrf.mxu0
        %v881 = vadd.f32 %v796, %v880
        %v882 = vpop.f32.mrf.mxu0
        %v883 = vpop.f32.mrf.mxu0
        %v884 = vpop.f32.mrf.mxu0
        %885 = vdwg.mxu0
        %v886 = vmax.f32 %v881, 0.0
        %v887 = vpack.c.bf16 %v886, %v886
        %v888 = vld [vmem:[#allocation10] sm:$0xf]
        %v889 = vld [vmem:[#allocation10 + $0x4] sm:$0xf]
        %v890 = vld [vmem:[#allocation10 + $0x8] sm:$0xf]
        %v891 = vld [vmem:[#allocation10 + $0xc] sm:$0xf]
        %v892 = vld [vmem:[#allocation10 + $0x10] sm:$0xf]
        %v893 = vld [vmem:[#allocation10 + $0x14] sm:$0xf]
        %v894 = vld [vmem:[#allocation10 + $0x18] sm:$0xf]
        %v895 = vld [vmem:[#allocation10 + $0x1c] sm:$0xf]
        %v896 = vld [vmem:[#allocation10 + $0x20] sm:$0xf]
        %v897 = vld [vmem:[#allocation10 + $0x24] sm:$0xf]
        %v898 = vld [vmem:[#allocation10 + $0x28] sm:$0xf]
        %v899 = vld [vmem:[#allocation10 + $0x2c] sm:$0xf]
        %v900 = vld [vmem:[#allocation10 + $0x30] sm:$0xf]
        %v901 = vld [vmem:[#allocation10 + $0x34] sm:$0xf]
        %v902 = vld [vmem:[#allocation10 + $0x38] sm:$0xf]
        %v903 = vld [vmem:[#allocation10 + $0x3c] sm:$0xf]
        %v904 = vld [vmem:[%s7] sm:$0x1]
        %v906 = vlaneseq
        %v907 = vshrl.u32 %v906, 7
        %v908 = vsub.s32 0, %v907
        %v909 = vrot.slane %v904, %v908
        %v927 = vunpack.c.l.b16 %v888
        %v928 = vunpack.c.l.b16 %v889
        %v929 = vunpack.c.l.b16 %v890
        %v930 = vunpack.c.l.b16 %v891
        %v931 = vunpack.c.l.b16 %v892
        %v932 = vunpack.c.l.b16 %v893
        %v933 = vunpack.c.l.b16 %v894
        %v934 = vunpack.c.l.b16 %v895
        %v935 = vunpack.c.l.b16 %v896
        %v936 = vunpack.c.l.b16 %v897
        %v937 = vunpack.c.l.b16 %v898
        %v938 = vunpack.c.l.b16 %v899
        %v939 = vunpack.c.l.b16 %v900
        %v940 = vunpack.c.l.b16 %v901
        %v941 = vunpack.c.l.b16 %v902
        %v942 = vunpack.c.l.b16 %v903
        %v943 = vpack.c.b16 %v928, %v927
        %v944 = vpack.c.b16 %v930, %v929
        %v945 = vpack.c.b16 %v932, %v931
        %v946 = vpack.c.b16 %v934, %v933
        %v947 = vpack.c.b16 %v936, %v935
        %v948 = vpack.c.b16 %v938, %v937
        %v949 = vpack.c.b16 %v940, %v939
        %v950 = vpack.c.b16 %v942, %v941
        %959 = vmatprep.subr.bf16.mxu0 0
        %960 = vmatpush1.bf16.msra.mxu0 %v950
        %961 = vmatprep.subr.bf16.mxu0 0
        %962 = vmatpush1.bf16.msra.mxu0 %v949
        %963 = vmatprep.subr.bf16.mxu0 0
        %964 = vmatpush1.bf16.msra.mxu0 %v948
        %965 = vmatprep.subr.bf16.mxu0 0
        %966 = vmatpush1.bf16.msra.mxu0 %v947
        %967 = vmatprep.subr.bf16.mxu0 0
        %968 = vmatpush1.bf16.msra.mxu0 %v946
        %969 = vmatprep.subr.bf16.mxu0 0
        %970 = vmatpush1.bf16.msra.mxu0 %v945
        %971 = vmatprep.subr.bf16.mxu0 0
        %972 = vmatpush1.bf16.msra.mxu0 %v944
        %973 = vmatprep.subr.bf16.mxu0 0
        %974 = vmatpush1.bf16.msra.mxu0 %v943
        %975 = vmatprep.subr.bf16.mxu0 0
        %976 = vmatpush2.bf16.msra.mxu0 0
        %977 = vmatprep.subr.bf16.mxu0 0
        %978 = vmatpush2.bf16.msra.mxu0 0
        %979 = vmatprep.subr.bf16.mxu0 0
        %980 = vmatpush2.bf16.msra.mxu0 0
        %981 = vmatprep.subr.bf16.mxu0 0
        %982 = vmatpush2.bf16.msra.mxu0 0
        %983 = vmatprep.subr.bf16.mxu0 0
        %984 = vmatpush2.bf16.msra.mxu0 0
        %985 = vmatprep.subr.bf16.mxu0 0
        %986 = vmatpush2.bf16.msra.mxu0 0
        %987 = vmatprep.subr.bf16.mxu0 0
        %988 = vmatpush2.bf16.msra.mxu0 0
        %989 = vmatprep.subr.bf16.mxu0 0
        %990 = vmatpush2.bf16.msra.mxu0 0
        %991 = vmatprep.mubr.bf16.mxu0 0
        %992 = vmatmul.mubr.bf16.gmra.mxu0 %v887
        %v993 = vpop.f32.mrf.mxu0
        %v994 = vadd.f32 %v909, %v993
        %v995 = vpop.f32.mrf.mxu0
        %v996 = vpop.f32.mrf.mxu0
        %v997 = vpop.f32.mrf.mxu0
        %998 = vdwg.mxu0
        %v999 = vmax.f32 %v994, 0.0
        %v1000 = vpack.c.bf16 %v999, %v999
        %v1001 = vld [vmem:[#allocation11] sm:$0xf]
        %v1002 = vld [vmem:[#allocation11 + $0x4] sm:$0xf]
        %v1003 = vld [vmem:[#allocation11 + $0x8] sm:$0xf]
        %v1004 = vld [vmem:[#allocation11 + $0xc] sm:$0xf]
        %v1005 = vld [vmem:[#allocation11 + $0x10] sm:$0xf]
        %v1006 = vld [vmem:[#allocation11 + $0x14] sm:$0xf]
        %v1007 = vld [vmem:[#allocation11 + $0x18] sm:$0xf]
        %v1008 = vld [vmem:[#allocation11 + $0x1c] sm:$0xf]
        %v1009 = vld [vmem:[#allocation11 + $0x20] sm:$0xf]
        %v1010 = vld [vmem:[#allocation11 + $0x24] sm:$0xf]
        %v1011 = vld [vmem:[#allocation11 + $0x28] sm:$0xf]
        %v1012 = vld [vmem:[#allocation11 + $0x2c] sm:$0xf]
        %v1013 = vld [vmem:[#allocation11 + $0x30] sm:$0xf]
        %v1014 = vld [vmem:[#allocation11 + $0x34] sm:$0xf]
        %v1015 = vld [vmem:[#allocation11 + $0x38] sm:$0xf]
        %v1016 = vld [vmem:[#allocation11 + $0x3c] sm:$0xf]
        %v1017 = vld [vmem:[%s9] sm:$0x1]
        %v1019 = vlaneseq
        %v1020 = vshrl.u32 %v1019, 7
        %v1021 = vsub.s32 0, %v1020
        %v1022 = vrot.slane %v1017, %v1021
        %v1040 = vunpack.c.l.b16 %v1001
        %v1041 = vunpack.c.l.b16 %v1002
        %v1042 = vunpack.c.l.b16 %v1003
        %v1043 = vunpack.c.l.b16 %v1004
        %v1044 = vunpack.c.l.b16 %v1005
        %v1045 = vunpack.c.l.b16 %v1006
        %v1046 = vunpack.c.l.b16 %v1007
        %v1047 = vunpack.c.l.b16 %v1008
        %v1048 = vunpack.c.l.b16 %v1009
        %v1049 = vunpack.c.l.b16 %v1010
        %v1050 = vunpack.c.l.b16 %v1011
        %v1051 = vunpack.c.l.b16 %v1012
        %v1052 = vunpack.c.l.b16 %v1013
        %v1053 = vunpack.c.l.b16 %v1014
        %v1054 = vunpack.c.l.b16 %v1015
        %v1055 = vunpack.c.l.b16 %v1016
        %v1056 = vpack.c.b16 %v1041, %v1040
        %v1057 = vpack.c.b16 %v1043, %v1042
        %v1058 = vpack.c.b16 %v1045, %v1044
        %v1059 = vpack.c.b16 %v1047, %v1046
        %v1060 = vpack.c.b16 %v1049, %v1048
        %v1061 = vpack.c.b16 %v1051, %v1050
        %v1062 = vpack.c.b16 %v1053, %v1052
        %v1063 = vpack.c.b16 %v1055, %v1054
        %1072 = vmatprep.subr.bf16.mxu0 0
        %1073 = vmatpush1.bf16.msra.mxu0 %v1063
        %1074 = vmatprep.subr.bf16.mxu0 0
        %1075 = vmatpush1.bf16.msra.mxu0 %v1062
        %1076 = vmatprep.subr.bf16.mxu0 0
        %1077 = vmatpush1.bf16.msra.mxu0 %v1061
        %1078 = vmatprep.subr.bf16.mxu0 0
        %1079 = vmatpush1.bf16.msra.mxu0 %v1060
        %1080 = vmatprep.subr.bf16.mxu0 0
        %1081 = vmatpush1.bf16.msra.mxu0 %v1059
        %1082 = vmatprep.subr.bf16.mxu0 0
        %1083 = vmatpush1.bf16.msra.mxu0 %v1058
        %1084 = vmatprep.subr.bf16.mxu0 0
        %1085 = vmatpush1.bf16.msra.mxu0 %v1057
        %1086 = vmatprep.subr.bf16.mxu0 0
        %1087 = vmatpush1.bf16.msra.mxu0 %v1056
        %1088 = vmatprep.subr.bf16.mxu0 0
        %1089 = vmatpush2.bf16.msra.mxu0 0
        %1090 = vmatprep.subr.bf16.mxu0 0
        %1091 = vmatpush2.bf16.msra.mxu0 0
        %1092 = vmatprep.subr.bf16.mxu0 0
        %1093 = vmatpush2.bf16.msra.mxu0 0
        %1094 = vmatprep.subr.bf16.mxu0 0
        %1095 = vmatpush2.bf16.msra.mxu0 0
        %1096 = vmatprep.subr.bf16.mxu0 0
        %1097 = vmatpush2.bf16.msra.mxu0 0
        %1098 = vmatprep.subr.bf16.mxu0 0
        %1099 = vmatpush2.bf16.msra.mxu0 0
        %1100 = vmatprep.subr.bf16.mxu0 0
        %1101 = vmatpush2.bf16.msra.mxu0 0
        %1102 = vmatprep.subr.bf16.mxu0 0
        %1103 = vmatpush2.bf16.msra.mxu0 0
        %1104 = vmatprep.mubr.bf16.mxu0 0
        %1105 = vmatmul.mubr.bf16.gmra.mxu0 %v1000
        %v1106 = vpop.f32.mrf.mxu0
        %v1107 = vadd.f32 %v1022, %v1106
        %v1108 = vpop.f32.mrf.mxu0
        %v1109 = vpop.f32.mrf.mxu0
        %v1110 = vpop.f32.mrf.mxu0
        %1111 = vdwg.mxu0
        %1112 = vst [vmem:[%s469] sm:$0xff] %v1107
        %s1113 = sand.u32 %s260, 1
        %s1114 = scalar_lea.sflag [#allocation4], %s1113
        %s1115 = sand.u32 %s260, 1
        %s1116 = smul.addr %s1115, 8
        %s1117 = scalar_lea.vmem [#allocation13], %s1116
        // Predicated region
        $region85: #{tpu_custom_call.1} parent=59 // pred_check
          %p1118 = pneg %p270
        $region86: #{tpu_custom_call.1} parent=59 // pred_check_branch
          %1120 = sbr.rel (%p1118) target = $region88
        $region87: #{tpu_custom_call.1} parent=59 // pred_region
          %s1122 = ssub.s32 128, 128
          %1123 = vsyncadd %s1114, %s1122
          %s1124 = smul.addr %s32, 128
          %s1125 = scalar_lea.hbm %s10, %s1124
          %s1127 = sshll.u32 %s1117, 4
          %s1128 = int_to_ptr.vmem [resolvable:$true] %s1127
          %1130 = dma.vmem_to_hbm [thread:$0]  %s1128, 128, %s1125, %s1114
        $region88: #{tpu_custom_call.1} parent=59 // pred_fallthru
          _
      $region60: #{tpu_custom_call.1} parent=5 // pred_fallthru
        _
      %p1131 = scmp.le.s32.totalorder 2, %s27
      // Predicated region
      $region89: #{tpu_custom_call.1} parent=5 // pred_check
        %p1132 = pneg %p1131
      $region90: #{tpu_custom_call.1} parent=5 // pred_check_branch
        %1134 = sbr.rel (%p1132) target = $region92
      $region91: #{tpu_custom_call.1} parent=5 // pred_region
        %s1135 = ssub.s32 %s27, 2
        // Predicated region
        $region93: #{tpu_custom_call.1} parent=91 // pred_check
          %p1136 = pneg %p276
        $region94: #{tpu_custom_call.1} parent=91 // pred_check_branch
          %1138 = sbr.rel (%p1136) target = $region96
        $region95: #{tpu_custom_call.1} parent=91 // pred_region
          %s1139 = sand.u32 %s261, 1
          %s1140 = scalar_lea.sflag [#allocation4], %s1139
          %s1141 = sand.u32 %s261, 1
          %s1142 = smul.addr %s1141, 8
          %s1143 = scalar_lea.vmem [#allocation13], %s1142
          %1144 = dma.done %s1140, 128
        $region96: #{tpu_custom_call.1} parent=91 // pred_fallthru
          _
      $region92: #{tpu_custom_call.1} parent=5 // pred_fallthru
        _
    $region6: #{tpu_custom_call.1} parent=1 // loop_footer
      %s31 = sadd.s32 1, %s27
    $region7: #{tpu_custom_call.1} parent=1 // loop_footer_branch
      %26 = sbr.rel target = $region3
    $region8: #{tpu_custom_call.1} parent=1 // loop_exit
      _
    %1145 = vsyncpa [#allocation3], 1
    %s1146 = scalar_lea.sflag [#allocation3], 1
    %1147 = vsyncpa %s1146, 1
    %1148 = vsyncpa [#allocation6], 1
    %s1149 = scalar_lea.sflag [#allocation6], 1
    %1150 = vsyncpa %s1149, 1
    %1151 = vsyncpa [#allocation9], 1
    %1152 = vsyncpa [#allocation12], 1
    %1153 = vsyncpa [#allocation4], 1
    %s1154 = scalar_lea.sflag [#allocation4], 1
    %1155 = vsyncpa %s1154, 1

</llo_original>
